<compile_context>
chip_gen: v7x
topology: tpu7x:2x2x1
jax: 0.10.0
libtpu: 0.0.40
codegen_flags: <defaults>
</compile_context>

<pallas_src>
import jax
import jax.numpy as jnp
from jax import lax
from jax.experimental import pallas as pl
from jax.experimental.pallas import tpu as pltpu

BN_EPS = 1e-5


def _fused_bn_relu_kernel(x_ref, scale_ref, shift_ref, o_ref):
    # x_ref/o_ref: (tile_r, tile_c).  scale/shift broadcast either over lanes
    # (shape (tile_r, 1)) or over sublanes (shape (1, tile_c)).
    s = scale_ref[...]
    b = shift_ref[...]
    x = x_ref[...].astype(s.dtype)          # no-op when compute dtype == x dtype
    y = x * s + b                           # fused BN affine
    zero = jnp.zeros((), dtype=y.dtype)
    o_ref[...] = jnp.maximum(y, zero).astype(o_ref.dtype)   # fused ReLU + cast


def _sublane_pack(itemsize):
    # Native sublane packing granularity per element width.
    return {1: 32, 2: 16, 4: 8}.get(itemsize, 8)


def _pick_tiles(R, L, itemsize, max_block_bytes):
    """Pick (tile_r, tile_c, pack) obeying the (pack,128)-or-full-dim rule,
    targeting ~max_block_bytes per block."""
    pack = _sublane_pack(itemsize)
    target_elems = max(max_block_bytes // itemsize, pack * 128)

    # Lane (last) dim: full L if it fits the byte budget, otherwise a
    # 128-multiple (Pallas handles the ragged final lane block).
    if L <= target_elems:
        tile_c = L
    else:
        tile_c = max((target_elems // 128) * 128, 128)

    # Sublane dim: full R, or a pack-multiple sized to the remaining budget.
    rows_target = max(target_elems // max(tile_c, 1), 1)
    if R <= rows_target or R <= pack:
        tile_r = R
    else:
        tile_r = max((min(rows_target, R) // pack) * pack, pack)
    return tile_r, tile_c, pack


def _ensure_multi_block(tile_r, tile_c, R, L, pack):
    """If the whole array fits in a single block, split it so both v7x
    TensorCores get work (no effect on correctness; harmless on v5e/v6e)."""
    if pl.cdiv(R, tile_r) * pl.cdiv(L, tile_c) > 1:
        return tile_r, tile_c
    if tile_c >= 256:
        # halve lanes, rounded up to a 128-multiple (legal tile, ragged tail ok)
        return tile_r, ((tile_c // 2 + 127) // 128) * 128
    if tile_r >= 2 * pack:
        # halve rows, rounded up to the packing granularity
        return ((tile_r // 2 + pack - 1) // pack) * pack, tile_c
    return tile_r, tile_c


def _pick_compute_dtype(x_dtype):
    if x_dtype == jnp.bfloat16:
        # v6e/v7x have native bf16 VALU; v5x does not -> keep f32 compute there.
        try:
            kind = jax.devices()[0].device_kind.lower()
        except Exception:
            kind = ""
        if "v5" in kind:
            return jnp.float32
        return jnp.bfloat16
    return jnp.float32


def fused_bn_relu(x_nchw, gamma, beta, running_mean, running_var,
                  *, eps=BN_EPS, max_block_bytes=6 * 1024 * 1024,
                  compute_dtype=None):
    """ReLU(BatchNorm2d(x)) using running statistics. NCHW in / NCHW out."""
    N, C, H, W = x_nchw.shape
    HW = H * W
    out_dtype = x_nchw.dtype
    itemsize = jnp.dtype(out_dtype).itemsize
    if compute_dtype is None:
        compute_dtype = _pick_compute_dtype(out_dtype)
    param_itemsize = jnp.dtype(compute_dtype).itemsize

    # Fold BN running stats into per-channel scale/shift (O(C) host work, f32).
    scale = gamma.astype(jnp.float32) * lax.rsqrt(
        running_var.astype(jnp.float32) + jnp.float32(eps))
    shift = beta.astype(jnp.float32) - scale * running_mean.astype(jnp.float32)
    scale = scale.astype(compute_dtype)
    shift = shift.astype(compute_dtype)

    # Layout selection: keep the lane axis dense (biggest measured lever).
    lane_affine = (HW % 128 != 0)
    if lane_affine:
        # (N, C*H*W): free contiguous reshape; params broadcast along lanes.
        R, L = N, C * HW
        x2 = x_nchw.reshape(R, L)
        scale_p = jnp.repeat(scale, HW).reshape(1, L)
        shift_p = jnp.repeat(shift, HW).reshape(1, L)
    else:
        # (N*C, H*W): free contiguous reshape; params broadcast along sublanes.
        R, L = N * C, HW
        x2 = x_nchw.reshape(R, L)
        scale_p = jnp.tile(scale, N).reshape(R, 1)
        shift_p = jnp.tile(shift, N).reshape(R, 1)

    tile_r, tile_c, pack = _pick_tiles(R, L, itemsize, max_block_bytes)
    tile_r, tile_c = _ensure_multi_block(tile_r, tile_c, R, L, pack)

    # Grid order: row-blocks outer, lane-blocks inner (last).  In the
    # row-affine layout the (tile_r, 1) param block index is then constant
    # across consecutive steps, so Pallas skips re-DMA of the params.
    grid = (pl.cdiv(R, tile_r), pl.cdiv(L, tile_c))

    if lane_affine:
        param_spec = pl.BlockSpec((1, tile_c), lambda i, j: (0, j))
        param_tile_elems = tile_c
    else:
        param_spec = pl.BlockSpec((tile_r, 1), lambda i, j: (i, 0))
        param_tile_elems = tile_r

    # VMEM budget: x and out are each double-buffered -> ~4x block bytes.
    block_bytes = tile_r * tile_c * itemsize
    vmem_limit = int(min(max(4 * block_bytes + 4 * param_tile_elems * param_itemsize
                             + (4 << 20), 32 << 20), 48 << 20))

    cost = pl.CostEstimate(
        flops=3 * R * L,                     # mul + add + max per element
        transcendentals=0,
        bytes_accessed=2 * R * L * itemsize
        + 2 * (L if lane_affine else R) * param_itemsize,
    )

    out2 = pl.pallas_call(
        _fused_bn_relu_kernel,
        out_shape=jax.ShapeDtypeStruct((R, L), out_dtype),
        grid=grid,
        in_specs=[
            pl.BlockSpec((tile_r, tile_c), lambda i, j: (i, j)),  # x
            param_spec,                                           # scale
            param_spec,                                           # shift
        ],
        out_specs=pl.BlockSpec((tile_r, tile_c), lambda i, j: (i, j)),
        compiler_params=pltpu.CompilerParams(
            dimension_semantics=("parallel", "parallel"),
            vmem_limit_bytes=vmem_limit,
        ),
        cost_estimate=cost,
    )(x2, scale_p, shift_p)

    return out2.reshape(N, C, H, W)


# TODO(synk): training-mode path (_fake_quantized_bn: batch-stat BN, per-channel
# weight fake-quant with STE, EMA activation-range tracking, activation
# fake-quant) is stateful QAT bookkeeping with no clean single-kernel Pallas
# equivalent; only the eval-mode fused BN+ReLU hot path is implemented here.


def _reference(x_nchw, gamma, beta, mean, var, eps=BN_EPS):
    x32 = x_nchw.astype(jnp.float32)
    inv = lax.rsqrt(var[None, :, None, None] + eps)
    y = (x32 - mean[None, :, None, None]) * inv * gamma[None, :, None, None] \
        + beta[None, :, None, None]
    return jnp.maximum(y, 0.0)


if __name__ == "__main__":
    key = jax.random.PRNGKey(0)

    def make_case(k, N, C, H, W, dtype):
        k_x, k_g, k_b, k_m, k_v = jax.random.split(k, 5)
        x = jax.random.normal(k_x, (N, C, H, W), dtype=jnp.float32).astype(dtype)
        gamma = 1.0 + 0.1 * jax.random.normal(k_g, (C,), dtype=jnp.float32)
        beta = 0.1 * jax.random.normal(k_b, (C,), dtype=jnp.float32)
        mean = 0.2 * jax.random.normal(k_m, (C,), dtype=jnp.float32)
        var = jnp.abs(1.0 + 0.1 * jax.random.normal(k_v, (C,), dtype=jnp.float32))
        return x, gamma, beta, mean, var

    keys = jax.random.split(key, 4)

    # 1) main case (module-consistent small shape): row-affine layout,
    #    forced 2-step parallel grid.
    x, g, b, m, v = make_case(keys[0], 2, 4, 16, 16, jnp.float32)
    out = jax.block_until_ready(fused_bn_relu(x, g, b, m, v))
    assert out.shape == x.shape and out.dtype == x.dtype
    assert jnp.allclose(out, _reference(x, g, b, m, v), atol=1e-5, rtol=1e-5), \
        "mismatch (f32, row-affine)"

    # 2) non-128-multiple spatial size (7x7, ResNet tail): lane-affine layout.
    x, g, b, m, v = make_case(keys[1], 2, 4, 7, 7, jnp.float32)
    out = jax.block_until_ready(fused_bn_relu(x, g, b, m, v))
    assert jnp.allclose(out, _reference(x, g, b, m, v), atol=1e-5, rtol=1e-5), \
        "mismatch (f32, lane-affine)"

    # 3) multi-block grid with a ragged final lane block (tiny block budget).
    x, g, b, m, v = make_case(keys[2], 2, 3, 20, 20, jnp.float32)
    out = jax.block_until_ready(fused_bn_relu(x, g, b, m, v, max_block_bytes=4096))
    assert jnp.allclose(out, _reference(x, g, b, m, v), atol=1e-5, rtol=1e-5), \
        "mismatch (f32, ragged multi-block)"

    # 4) bf16 I/O (bf16-native compute on v6e/v7x, f32 compute on v5x).
    x, g, b, m, v = make_case(keys[3], 2, 4, 16, 16, jnp.bfloat16)
    out = jax.block_until_ready(fused_bn_relu(x, g, b, m, v))
    assert out.dtype == jnp.bfloat16
    assert jnp.allclose(out.astype(jnp.float32), _reference(x, g, b, m, v),
                        atol=5e-2, rtol=5e-2), "mismatch (bf16)"

    print("KERNEL_OK")
</pallas_src>

<mosaic_0001>
module attributes {stable_mosaic.version = 11 : i64} {
  func.func @_fused_bn_relu_kernel(%arg0: i32, %arg1: i32, %arg2: memref<8x128xf32, #tpu.memory_space<vmem>>, %arg3: memref<8x1xf32, #tpu.memory_space<vmem>>, %arg4: memref<8x1xf32, #tpu.memory_space<vmem>>, %arg5: memref<8x128xf32, #tpu.memory_space<vmem>>) attributes {dimension_semantics = [#tpu.dimension_semantics<parallel>, #tpu.dimension_semantics<parallel>], iteration_bounds = array<i64: 1, 2>, scalar_prefetch = 0 : i64, scratch_operands = 0 : i64, tpu.core_type = #tpu.core_type<tc>, window_params = [{transform_indices = @transform_0, window_bounds = array<i64: 8, 128>}, {transform_indices = @transform_1, window_bounds = array<i64: 8, 1>}, {transform_indices = @transform_2, window_bounds = array<i64: 8, 1>}, {transform_indices = @transform_3, window_bounds = array<i64: 8, 128>}]} {
    %c0 = arith.constant 0 : index
    %c0_0 = arith.constant 0 : index
    %0 = vector.load %arg3[%c0, %c0_0] : memref<8x1xf32, #tpu.memory_space<vmem>>, vector<8x1xf32>
    %c0_1 = arith.constant 0 : index
    %c0_2 = arith.constant 0 : index
    %1 = vector.load %arg4[%c0_1, %c0_2] : memref<8x1xf32, #tpu.memory_space<vmem>>, vector<8x1xf32>
    %c0_3 = arith.constant 0 : index
    %c0_4 = arith.constant 0 : index
    %2 = vector.load %arg2[%c0_3, %c0_4] : memref<8x128xf32, #tpu.memory_space<vmem>>, vector<8x128xf32>
    %3 = vector.broadcast %0 : vector<8x1xf32> to vector<8x128xf32>
    %4 = arith.mulf %2, %3 : vector<8x128xf32>
    %5 = vector.broadcast %1 : vector<8x1xf32> to vector<8x128xf32>
    %6 = arith.addf %4, %5 : vector<8x128xf32>
    %cst = arith.constant 0.000000e+00 : f32
    %7 = vector.broadcast %cst : f32 to vector<8x128xf32>
    %8 = arith.maximumf %6, %7 : vector<8x128xf32>
    %c0_5 = arith.constant 0 : index
    %c0_6 = arith.constant 0 : index
    %9 = vector.load %arg5[%c0_5, %c0_6] : memref<8x128xf32, #tpu.memory_space<vmem>>, vector<8x128xf32>
    tpu.vector_store %arg5[%c0_5, %c0_6], %8 {strides = array<i32>} : memref<8x128xf32, #tpu.memory_space<vmem>>, vector<8x128xf32>,
    return
  }
  func.func @transform_0(%arg0: i32, %arg1: i32) -> (i32, i32) {
    %c0_i32 = arith.constant 0 : i32
    return %arg0, %arg1 : i32, i32
  }
  func.func @transform_1(%arg0: i32, %arg1: i32) -> (i32, i32) {
    %c0_i32 = arith.constant 0 : i32
    %c0_i32_0 = arith.constant 0 : i32
    return %arg0, %c0_i32 : i32, i32
  }
  func.func @transform_2(%arg0: i32, %arg1: i32) -> (i32, i32) {
    %c0_i32 = arith.constant 0 : i32
    %c0_i32_0 = arith.constant 0 : i32
    return %arg0, %c0_i32 : i32, i32
  }
  func.func @transform_3(%arg0: i32, %arg1: i32) -> (i32, i32) {
    %c0_i32 = arith.constant 0 : i32
    return %arg0, %arg1 : i32, i32
  }
}

</mosaic_0001>

<llo_original>
// kernel: tpu_custom_call.1
$region0: #{tpu_custom_call.1}
  #allocation0 [shape = 'u32[]', space=smem, size = 0x4, offset = 0x4, fixed_abs, tag = 'smem constant byte address 0x4 - core index']
  #allocation1 [shape = 'u32[144,128]{1,0:T(1,128)}', space=vmem, size = 0x12000, scoped, tag = 'internal scratch']
  %s0 = inlined_call_operand.vmem [shape: f32[8,256], index: 0, kind: input, shape index: {}]
  %s1 = inlined_call_operand.vmem [shape: f32[8,1], index: 1, kind: input, shape index: {}]
  %s2 = inlined_call_operand.vmem [shape: f32[8,1], index: 2, kind: input, shape index: {}]
  %s3 = inlined_call_operand.hbm [shape: f32[8,256], index: 3, kind: output, shape index: {}]
  %s4 = sld [smem:[#allocation0]]
  $region45: #{tpu_custom_call.1} parent=0
    _
  %s6 = ssub.s32 1, %s4
  %s7 = scalar_select 0, %s6, %s4
  $region1: #{tpu_custom_call.1} parent=0
    #allocation2 [shape = 'u8[8192]{0}', space=vmem, size = 0x2000, scoped, tag = 'output window, operand 0']
    #allocation3 [shape = 's32[2]{0}', space=sflag, size = 0x8, scoped, tag = 'scoped memory for tpu_custom_call.1']
    %8 = vsyncpa [#allocation3], 0
    %s9 = scalar_lea.sflag [#allocation3], 1
    %10 = vsyncpa %s9, 0
    loop: start=0, step=1, limit=4
    $region2: #{tpu_custom_call.1} parent=1 // loop_pre_header
      _
    $region3: #{tpu_custom_call.1} parent=1 // loop_header
      %s12 = sphi 0, %s16
      %p13 = scmp.ge.s32.totalorder %s12, 4
      %s19 = sphi 0, %s31
      %s20 = sphi 0, %s27
      %s21 = sphi 0, %s19
      %s22 = sphi 0, %s20
      %s23 = sphi 0, %s21
      %s24 = sphi 0, %s22
      %s36 = sphi 0, %s38
      %s39 = sphi 0, %s36
      %s40 = sphi 0, %s39
      %s56 = sphi 0, %s40
      %s62 = sphi 0, %s64
      %s65 = sphi 0, %s62
      %s66 = sphi 0, %s65
      %s82 = sphi 0, %s66
      %s88 = sphi 0, %s90
      %s91 = sphi 0, %s88
      %s92 = sphi 0, %s91
      %s108 = sphi 0, %s92
      %s116 = sphi 0, %s118
      %s119 = sphi 0, %s116
      %s120 = sphi 0, %s119
      %s136 = sphi 0, %s120
    $region4: #{tpu_custom_call.1} parent=1 // loop_header_branch
      %15 = sbr.rel (%p13) target = $region8
    $region5: #{tpu_custom_call.1} parent=1 // loop_body
      %s17 = ssub.s32 %s12, 1
      %s18 = ssub.s32 %s12, 2
      %s25 = sadd.s32 1, %s20
      %p26 = scmp.ge.s32.totalorder %s25, 2
      %s27 = scalar_select %p26, 0, %s25
      %s28 = sadd.s32 1, %s19
      %s29 = scalar_select %p26, %s28, %s19
      %p30 = scmp.ge.s32.totalorder %s29, 1
      %s31 = scalar_select %p30, 0, %s29
      %s32 = ssub.s32 %s19, %s31
      %s33 = ssub.s32 %s20, %s27
      %s34 = sor.u32 %s32, %s33
      %p35 = scmp.eq.s32.totalorder %s34, 0
      %s37 = sadd.s32 %s36, 1
      %s38 = scalar_select %p35, %s36, %s37
      %p41 = pneg %p35
      %p42 = scmp.eq.s32.totalorder %s12, 1
      %p43 = por %p41, %p42
      %p44 = scmp.ne.s32.totalorder %s36, %s39
      %p45 = scmp.eq.s32.totalorder %s12, 0
      %p46 = por %p44, %p45
      %p47 = scmp.ne.s32.totalorder %s36, %s39
      %p48 = scmp.eq.s32.totalorder %s17, 1
      %p49 = por %p47, %p48
      %p50 = scmp.ne.s32.totalorder %s39, %s40
      %p51 = scmp.eq.s32.totalorder %s17, 0
      %p52 = por %p50, %p51
      %p53 = scmp.ne.s32.totalorder %s39, %s40
      %p54 = scmp.eq.s32.totalorder %s18, 1
      %p55 = por %p53, %p54
      %p57 = scmp.ne.s32.totalorder %s40, %s56
      %p58 = scmp.eq.s32.totalorder %s18, 0
      %p59 = por %p57, %p58
      %s60 = ssub.s32 %s19, %s31
      %p61 = scmp.eq.s32.totalorder %s60, 0
      %s63 = sadd.s32 %s62, 1
      %s64 = scalar_select %p61, %s62, %s63
      %p67 = pneg %p61
      %p68 = scmp.eq.s32.totalorder %s12, 1
      %p69 = por %p67, %p68
      %p70 = scmp.ne.s32.totalorder %s62, %s65
      %p71 = scmp.eq.s32.totalorder %s12, 0
      %p72 = por %p70, %p71
      %p73 = scmp.ne.s32.totalorder %s62, %s65
      %p74 = scmp.eq.s32.totalorder %s17, 1
      %p75 = por %p73, %p74
      %p76 = scmp.ne.s32.totalorder %s65, %s66
      %p77 = scmp.eq.s32.totalorder %s17, 0
      %p78 = por %p76, %p77
      %p79 = scmp.ne.s32.totalorder %s65, %s66
      %p80 = scmp.eq.s32.totalorder %s18, 1
      %p81 = por %p79, %p80
      %p83 = scmp.ne.s32.totalorder %s66, %s82
      %p84 = scmp.eq.s32.totalorder %s18, 0
      %p85 = por %p83, %p84
      %s86 = ssub.s32 %s19, %s31
      %p87 = scmp.eq.s32.totalorder %s86, 0
      %s89 = sadd.s32 %s88, 1
      %s90 = scalar_select %p87, %s88, %s89
      %p93 = pneg %p87
      %p94 = scmp.eq.s32.totalorder %s12, 1
      %p95 = por %p93, %p94
      %p96 = scmp.ne.s32.totalorder %s88, %s91
      %p97 = scmp.eq.s32.totalorder %s12, 0
      %p98 = por %p96, %p97
      %p99 = scmp.ne.s32.totalorder %s88, %s91
      %p100 = scmp.eq.s32.totalorder %s17, 1
      %p101 = por %p99, %p100
      %p102 = scmp.ne.s32.totalorder %s91, %s92
      %p103 = scmp.eq.s32.totalorder %s17, 0
      %p104 = por %p102, %p103
      %p105 = scmp.ne.s32.totalorder %s91, %s92
      %p106 = scmp.eq.s32.totalorder %s18, 1
      %p107 = por %p105, %p106
      %p109 = scmp.ne.s32.totalorder %s92, %s108
      %p110 = scmp.eq.s32.totalorder %s18, 0
      %p111 = por %p109, %p110
      %s112 = ssub.s32 %s19, %s31
      %s113 = ssub.s32 %s20, %s27
      %s114 = sor.u32 %s112, %s113
      %p115 = scmp.eq.s32.totalorder %s114, 0
      %s117 = sadd.s32 %s116, 1
      %s118 = scalar_select %p115, %s116, %s117
      %p121 = pneg %p115
      %p122 = scmp.eq.s32.totalorder %s12, 1
      %p123 = por %p121, %p122
      %p124 = scmp.ne.s32.totalorder %s116, %s119
      %p125 = scmp.eq.s32.totalorder %s12, 0
      %p126 = por %p124, %p125
      %p127 = scmp.ne.s32.totalorder %s116, %s119
      %p128 = scmp.eq.s32.totalorder %s17, 1
      %p129 = por %p127, %p128
      %p130 = scmp.ne.s32.totalorder %s119, %s120
      %p131 = scmp.eq.s32.totalorder %s17, 0
      %p132 = por %p130, %p131
      %p133 = scmp.ne.s32.totalorder %s119, %s120
      %p134 = scmp.eq.s32.totalorder %s18, 1
      %p135 = por %p133, %p134
      %p137 = scmp.ne.s32.totalorder %s120, %s136
      %p138 = scmp.eq.s32.totalorder %s18, 0
      %p139 = por %p137, %p138
      %p140 = scmp.le.s32.totalorder 1, %s12
      %p141 = scmp.lt.s32.totalorder %s12, 3
      %p142 = pnand %p140, %p141
      %p143 = pneg %p142
      // Predicated region
      $region9: #{tpu_custom_call.1} parent=5 // pred_check
        _
      $region10: #{tpu_custom_call.1} parent=5 // pred_check_branch
        %145 = sbr.rel (%p142) target = $region12
      $region11: #{tpu_custom_call.1} parent=5 // pred_region
        %s146 = ssub.s32 %s12, 1
        // Predicated region
        $region13: #{tpu_custom_call.1} parent=11 // pred_check
          %p147 = pneg %p78
        $region14: #{tpu_custom_call.1} parent=11 // pred_check_branch
          %149 = sbr.rel (%p147) target = $region16
        $region15: #{tpu_custom_call.1} parent=11 // pred_region
          %p150 = scmp.lt.s32.totalorder %s21, 0
          %s151 = scalar_select %p150, %s21, 0
          %s152 = smul.addr %s151, 8
          %s153 = scalar_lea.vmem %s1, %s152
        $region16: #{tpu_custom_call.1} parent=11 // pred_fallthru
          _
        // Predicated region
        $region17: #{tpu_custom_call.1} parent=11 // pred_check
          %p154 = pneg %p104
        $region18: #{tpu_custom_call.1} parent=11 // pred_check_branch
          %156 = sbr.rel (%p154) target = $region20
        $region19: #{tpu_custom_call.1} parent=11 // pred_region
          %p157 = scmp.lt.s32.totalorder %s21, 0
          %s158 = scalar_select %p157, %s21, 0
          %s159 = smul.addr %s158, 8
          %s160 = scalar_lea.vmem %s2, %s159
        $region20: #{tpu_custom_call.1} parent=11 // pred_fallthru
          _
      $region12: #{tpu_custom_call.1} parent=5 // pred_fallthru
        _
      %p161 = scmp.lt.s32.totalorder %s12, 2
      // Predicated region
      $region21: #{tpu_custom_call.1} parent=5 // pred_check
        %p162 = pneg %p161
      $region22: #{tpu_custom_call.1} parent=5 // pred_check_branch
        %164 = sbr.rel (%p162) target = $region24
      $region23: #{tpu_custom_call.1} parent=5 // pred_region
        // Predicated region
        $region25: #{tpu_custom_call.1} parent=23 // pred_check
          %p165 = pneg %p46
        $region26: #{tpu_custom_call.1} parent=23 // pred_check_branch
          %167 = sbr.rel (%p165) target = $region28
        $region27: #{tpu_custom_call.1} parent=23 // pred_region
          %p168 = scmp.lt.s32.totalorder %s19, 0
          %s169 = scalar_select %p168, %s19, 0
          %p170 = scmp.lt.s32.totalorder %s20, 1
          %s171 = scalar_select %p170, %s20, 1
          %s172 = smul.addr %s169, 2
          %s173 = sadd.s32 %s171, %s172
          %s174 = smul.addr %s173, 8
          %s175 = scalar_lea.vmem %s0, %s174
        $region28: #{tpu_custom_call.1} parent=23 // pred_fallthru
          _
      $region24: #{tpu_custom_call.1} parent=5 // pred_fallthru
        _
      %p176 = scmp.le.s32.totalorder 1, %s12
      %p177 = scmp.lt.s32.totalorder %s12, 3
      %p178 = pnand %p176, %p177
      %p179 = pneg %p178
      // Predicated region
      $region29: #{tpu_custom_call.1} parent=5 // pred_check
        _
      $region30: #{tpu_custom_call.1} parent=5 // pred_check_branch
        %181 = sbr.rel (%p178) target = $region32
      $region31: #{tpu_custom_call.1} parent=5 // pred_region
        %s182 = ssub.s32 %s12, 1
        %p183 = scmp.lt.s32.totalorder %s21, 0
        %s184 = scalar_select %p183, %s21, 0
        %p185 = scmp.lt.s32.totalorder %s22, 1
        %s186 = scalar_select %p185, %s22, 1
        %s187 = smul.addr %s184, 2
        %s188 = sadd.s32 %s186, %s187
        %s189 = smul.addr %s188, 8
        %s190 = scalar_lea.vmem %s0, %s189
        %p191 = pneg %p52
        %p192 = pneg %p49
        %p193 = scmp.lt.s32.totalorder %s21, 0
        %s194 = scalar_select %p193, %s21, 0
        %s195 = smul.addr %s194, 8
        %s196 = scalar_lea.vmem %s1, %s195
        %p197 = pneg %p78
        %p198 = pneg %p75
        %p199 = scmp.lt.s32.totalorder %s21, 0
        %s200 = scalar_select %p199, %s21, 0
        %s201 = smul.addr %s200, 8
        %s202 = scalar_lea.vmem %s2, %s201
        %p203 = pneg %p104
        %p204 = pneg %p101
        %p205 = pneg %p132
        %p206 = pneg %p129
        %s207 = sand.u32 %s119, 1
        %s208 = scalar_lea.sflag [#allocation3], %s207
        %s209 = sand.u32 %s119, 1
        %s210 = smul.addr %s209, 8
        %s211 = scalar_lea.vmem [#allocation2], %s210
        %p212 = scmp.lt.s32.totalorder %s21, 0
        %s213 = scalar_select %p212, %s21, 0
        %p214 = scmp.lt.s32.totalorder %s22, 1
        %s215 = scalar_select %p214, %s22, 1
        %s216 = smul.addr %s213, 2
        %s217 = sadd.s32 %s215, %s216
        %s218 = smul.addr %s217, 8
        %s219 = scalar_lea.vmem %s0, %s218
        %p220 = scmp.lt.s32.totalorder %s21, 0
        %s221 = scalar_select %p220, %s21, 0
        %s222 = smul.addr %s221, 8
        %s223 = scalar_lea.vmem %s1, %s222
        %p224 = scmp.lt.s32.totalorder %s21, 0
        %s225 = scalar_select %p224, %s21, 0
        %s226 = smul.addr %s225, 8
        %s227 = scalar_lea.vmem %s2, %s226
        %v228 = vld [vmem:[%s223] sm:$0xff]
        %v229 = vld [vmem:[%s227] sm:$0xff]
        %v230 = vld [vmem:[%s219] sm:$0xff]
        %232 = vset.pattern.permute.xlu0 0
        %233 = vperm.xlu0 %232, %v228
        %v234 = vpop.permute.xlu0 %233
        %v236 = vmul.f32 %v230, %v234
        %238 = vset.pattern.permute.xlu0 0
        %239 = vperm.xlu0 %238, %v229
        %v240 = vpop.permute.xlu0 %239
        %v242 = vadd.f32 %v236, %v240
        %v243 = vmax.f32 %v242, 0.0
        %244 = vst [vmem:[%s211] sm:$0xff] %v243
        %s245 = sand.u32 %s119, 1
        %s246 = scalar_lea.sflag [#allocation3], %s245
        %s247 = sand.u32 %s119, 1
        %s248 = smul.addr %s247, 8
        %s249 = scalar_lea.vmem [#allocation2], %s248
        // Predicated region
        $region33: #{tpu_custom_call.1} parent=31 // pred_check
          %p250 = pneg %p129
        $region34: #{tpu_custom_call.1} parent=31 // pred_check_branch
          %252 = sbr.rel (%p250) target = $region36
        $region35: #{tpu_custom_call.1} parent=31 // pred_region
          %s254 = ssub.s32 128, 128
          %255 = vsyncadd %s246, %s254
          %s256 = smul.addr %s21, 2
          %s257 = sadd.s32 %s22, %s256
          %s258 = smul.addr %s257, 128
          %s259 = scalar_lea.hbm %s3, %s258
          %s261 = sshll.u32 %s249, 4
          %s262 = int_to_ptr.vmem [resolvable:$true] %s261
          %264 = dma.vmem_to_hbm [thread:$0]  %s262, 128, %s259, %s246
        $region36: #{tpu_custom_call.1} parent=31 // pred_fallthru
          _
      $region32: #{tpu_custom_call.1} parent=5 // pred_fallthru
        _
      %p265 = scmp.le.s32.totalorder 2, %s12
      // Predicated region
      $region37: #{tpu_custom_call.1} parent=5 // pred_check
        %p266 = pneg %p265
      $region38: #{tpu_custom_call.1} parent=5 // pred_check_branch
        %268 = sbr.rel (%p266) target = $region40
      $region39: #{tpu_custom_call.1} parent=5 // pred_region
        %s269 = ssub.s32 %s12, 2
        // Predicated region
        $region41: #{tpu_custom_call.1} parent=39 // pred_check
          %p270 = pneg %p135
        $region42: #{tpu_custom_call.1} parent=39 // pred_check_branch
          %272 = sbr.rel (%p270) target = $region44
        $region43: #{tpu_custom_call.1} parent=39 // pred_region
          %s273 = sand.u32 %s120, 1
          %s274 = scalar_lea.sflag [#allocation3], %s273
          %s275 = sand.u32 %s120, 1
          %s276 = smul.addr %s275, 8
          %s277 = scalar_lea.vmem [#allocation2], %s276
          %278 = dma.done %s274, 128
        $region44: #{tpu_custom_call.1} parent=39 // pred_fallthru
          _
      $region40: #{tpu_custom_call.1} parent=5 // pred_fallthru
        _
    $region6: #{tpu_custom_call.1} parent=1 // loop_footer
      %s16 = sadd.s32 1, %s12
    $region7: #{tpu_custom_call.1} parent=1 // loop_footer_branch
      %11 = sbr.rel target = $region3
    $region8: #{tpu_custom_call.1} parent=1 // loop_exit
      _
    %279 = vsyncpa [#allocation3], 1
    %s280 = scalar_lea.sflag [#allocation3], 1
    %281 = vsyncpa %s280, 1

</llo_original>
